<compile_context>
chip_gen: v5e
topology: v5e:2x2
jax: 0.10.0
libtpu: 0.0.40
codegen_flags: <defaults>
</compile_context>

<pallas_src>
import functools

import jax
import jax.numpy as jnp
from jax.experimental import pallas as pl
from jax.experimental.pallas import tpu as pltpu

_TARGET_BLOCK_ELEMS = 2048 * 512   # ~4 MiB of f32 (2 MiB bf16) per stream/step


@functools.lru_cache(maxsize=1)
def _num_core_splits():
    """2 on v7x (two TensorCores per chip), 1 on v5e/v6e (single TC)."""
    try:
        kind = jax.devices()[0].device_kind.lower()
    except Exception:  # pragma: no cover - no device available at trace time
        return 1
    return 2 if ("v7" in kind or "7x" in kind) else 1


# ----------------------------------------------------------------------------
# Bilinear interpolation, align_corners=True (NCHW), separable matmul form.
# ----------------------------------------------------------------------------
def _interp_matrix(in_size, out_size):
    in_size, out_size = int(in_size), int(out_size)
    if in_size == out_size:
        return jnp.eye(out_size, dtype=jnp.float32)
    if out_size == 1:
        coords = jnp.zeros((1,), jnp.float32)
    else:
        scale = (in_size - 1) / (out_size - 1)
        coords = jnp.arange(out_size, dtype=jnp.float32) * scale
    i0 = jnp.clip(jnp.floor(coords), 0, in_size - 1).astype(jnp.int32)
    i1 = jnp.minimum(i0 + 1, in_size - 1)
    w = coords - i0.astype(jnp.float32)
    m0 = jax.nn.one_hot(i0, in_size, dtype=jnp.float32)
    m1 = jax.nn.one_hot(i1, in_size, dtype=jnp.float32)
    return m0 * (1.0 - w)[:, None] + m1 * w[:, None]


def interpolate_bilinear_align_corners(x, size):
    N, C, H, W = x.shape
    out_h, out_w = int(size[0]), int(size[1])
    if (H, W) == (out_h, out_w):
        return x
    wy = _interp_matrix(H, out_h)          # (out_h, H)
    wx = _interp_matrix(W, out_w)          # (out_w, W)
    xf = x.astype(jnp.float32)
    y = jnp.einsum('oi,ncij->ncoj', wy, xf, precision=jax.lax.Precision.HIGHEST)
    y = jnp.einsum('ncoj,pj->ncop', y, wx, precision=jax.lax.Precision.HIGHEST)
    return y.astype(x.dtype)   # keep streaming dtype = input dtype


# ----------------------------------------------------------------------------
# Pallas kernel: streaming masked reduction of g = log(input) - log(target).
# Each block is reduced in-registers down to a (1, lane) partial per statistic
# (no per-vreg RMW of a block-shaped accumulator); the cross-lane reduce and
# the lane-dense (8, 128) store happen only on the last grid step.
# ----------------------------------------------------------------------------
def _silog_reduce_kernel(*refs, spc, rows, has_mask):
    if has_mask:
        inp_ref, tgt_ref, msk_ref, out_ref, sum_acc, sq_acc, cnt_acc = refs
    else:
        inp_ref, tgt_ref, out_ref, sum_acc, sq_acc = refs
        msk_ref = cnt_acc = None

    p = pl.program_id(0)   # core-split axis ("parallel")
    i = pl.program_id(1)   # streaming axis ("arbitrary")

    @pl.when(i == 0)
    def _init():
        sum_acc[...] = jnp.zeros_like(sum_acc)
        sq_acc[...] = jnp.zeros_like(sq_acc)
        if has_mask:
            cnt_acc[...] = jnp.zeros_like(cnt_acc)

    # Row-validity mask handles the ragged last block and phantom (clamped)
    # blocks; `rows` and the block shape are static.
    blk_rows = inp_ref.shape[0]
    base_row = (p * spc + i) * blk_rows
    row_ids = base_row + jax.lax.broadcasted_iota(jnp.int32, inp_ref.shape, 0)
    valid = row_ids < rows
    if has_mask:
        valid = jnp.logical_and(valid, msk_ref[...] != 0)

    # Upcast to f32 in-kernel (inputs stream in their native dtype) and clamp
    # the log operands for invalid/padded elements so no NaN/-inf is ever
    # produced, even if this expression is refactored later.
    one = jnp.float32(1.0)
    x = jnp.where(valid, inp_ref[...].astype(jnp.float32), one)
    t = jnp.where(valid, tgt_ref[...].astype(jnp.float32), one)
    g = jnp.log(x) - jnp.log(t)

    # In-register block reduction: one small (1, lane) partial store per stat
    # per step instead of a full block-shaped accumulator RMW.
    sum_acc[...] += jnp.sum(g, axis=0, keepdims=True)
    sq_acc[...] += jnp.sum(g * g, axis=0, keepdims=True)
    if has_mask:
        cnt_acc[...] += jnp.sum(valid.astype(jnp.float32), axis=0, keepdims=True)

    @pl.when(i == pl.num_programs(1) - 1)
    def _finalize():
        s = jnp.sum(sum_acc[...])
        sq = jnp.sum(sq_acc[...])
        c = jnp.sum(cnt_acc[...]) if has_mask else jnp.float32(0.0)
        rid = jax.lax.broadcasted_iota(jnp.int32, (8, 128), 0)
        # row 0 = sum(g), row 1 = sum(g^2), row 2 = valid count (lane-dense).
        out_ref[...] = jnp.where(rid == 0, s, jnp.where(rid == 1, sq, c))


def _run_reduce(inp2, tgt2, msk2, has_mask, ncores):
    rows, lane = inp2.shape
    blk_rows = min(rows, _TARGET_BLOCK_ELEMS // lane)   # full dim or mult of 32
    n_blocks = pl.cdiv(rows, blk_rows)
    last_blk = n_blocks - 1
    spc = pl.cdiv(n_blocks, ncores)                     # steps per core

    def data_map(p, i):
        # Clamp phantom blocks to the last real block; their rows fail the
        # in-kernel bound check, so they contribute nothing.
        return (jnp.minimum(p * spc + i, last_blk), 0)

    data_spec = pl.BlockSpec((blk_rows, lane), data_map)
    out_spec = pl.BlockSpec((8, 128), lambda p, i: (p, 0))

    in_specs = [data_spec, data_spec]
    operands = [inp2, tgt2]
    n_scratch = 2
    if has_mask:
        in_specs.append(data_spec)
        operands.append(msk2)
        n_scratch = 3

    kernel = functools.partial(
        _silog_reduce_kernel, spc=spc, rows=rows, has_mask=has_mask)

    return pl.pallas_call(
        kernel,
        out_shape=jax.ShapeDtypeStruct((ncores * 8, 128), jnp.float32),
        grid_spec=pltpu.PrefetchScalarGridSpec(
            num_scalar_prefetch=0,
            grid=(ncores, spc),
            in_specs=in_specs,
            out_specs=out_spec,
            scratch_shapes=[pltpu.VMEM((1, lane), jnp.float32)
                            for _ in range(n_scratch)],
        ),
        compiler_params=pltpu.CompilerParams(
            dimension_semantics=("parallel", "arbitrary"),
            vmem_limit_bytes=48 * 1024 * 1024,
        ),
    )(*operands)


# ----------------------------------------------------------------------------
# Tiny tail (< lane elements) of the rare non-divisible case, in plain JAX.
# ----------------------------------------------------------------------------
def _tail_stats(inp, tgt, msk, has_mask):
    x = inp.astype(jnp.float32)
    t = tgt.astype(jnp.float32)
    if has_mask:
        v = msk != 0
        g = jnp.log(jnp.where(v, x, 1.0)) - jnp.log(jnp.where(v, t, 1.0))
        return jnp.sum(g), jnp.sum(g * g), jnp.sum(v.astype(jnp.float32))
    g = jnp.log(x) - jnp.log(t)
    return jnp.sum(g), jnp.sum(g * g), jnp.float32(x.size)


# ----------------------------------------------------------------------------
# SILogLoss.forward equivalent.
# ----------------------------------------------------------------------------
@functools.partial(jax.jit, static_argnames=("interpolate", "has_mask", "ncores"))
def _silog_loss_impl(inp, tgt, msk, interpolate, has_mask, ncores):
    if interpolate:
        inp = interpolate_bilinear_align_corners(inp, tgt.shape[-2:])

    # Stream in native dtype; f32 upcast happens per-block inside the kernel.
    inp = inp.reshape(-1)
    tgt = tgt.reshape(-1)
    if has_mask:
        msk = msk.reshape(-1)
        if msk.dtype not in (jnp.int8, jnp.uint8):
            msk = (msk != 0).astype(jnp.int8)   # 1 B/elem stream

    n = inp.shape[0]

    # Pick the widest lane dim (free reshape); any <128-element remainder goes
    # through the plain-JAX tail path instead of padding full arrays.
    lane = next((c for c in (512, 256, 128) if n % c == 0), 128)
    n_main = (n // lane) * lane
    tail = n - n_main

    s = jnp.float32(0.0)
    sq = jnp.float32(0.0)
    cnt = jnp.float32(0.0)

    if n_main > 0:
        rows = n_main // lane
        inp2 = inp[:n_main].reshape(rows, lane)
        tgt2 = tgt[:n_main].reshape(rows, lane)
        m2 = msk[:n_main].reshape(rows, lane) if has_mask else None
        stats = _run_reduce(inp2, tgt2, m2, has_mask, ncores)
        stats = stats.reshape(ncores, 8, 128)
        s = s + jnp.sum(stats[:, 0, 0])
        sq = sq + jnp.sum(stats[:, 1, 0])
        cnt = cnt + (jnp.sum(stats[:, 2, 0]) if has_mask else jnp.float32(n_main))

    if tail > 0:
        ts, tsq, tc = _tail_stats(inp[n_main:], tgt[n_main:],
                                  msk[n_main:] if has_mask else None, has_mask)
        s = s + ts
        sq = sq + tsq
        cnt = cnt + tc

    mean = s / cnt
    # torch.var default is unbiased (correction=1).
    var = (sq - s * mean) / (cnt - 1.0)
    Dg = jnp.maximum(var + 0.15 * mean * mean, 0.0)   # guard f32 round-off
    return 10.0 * jnp.sqrt(Dg)


def silog_loss(inp, tgt, mask=None, interpolate=True):
    """JAX/Pallas equivalent of SILogLoss.forward (NCHW inputs)."""
    has_mask = mask is not None
    msk = mask if has_mask else jnp.zeros((1,), jnp.int8)
    return _silog_loss_impl(inp, tgt, msk, interpolate=interpolate,
                            has_mask=has_mask, ncores=_num_core_splits())


# ----------------------------------------------------------------------------
# Pure-JAX reference (gather-based interpolation) for sanity checks.
# ----------------------------------------------------------------------------
def _interpolate_ref(x, size):
    N, C, H, W = x.shape
    out_h, out_w = int(size[0]), int(size[1])
    if (H, W) == (out_h, out_w):
        return x

    def src_coords(in_size, out_size):
        if out_size == 1:
            return jnp.zeros((out_size,), jnp.float32)
        scale = (in_size - 1) / (out_size - 1)
        return jnp.arange(out_size, dtype=jnp.float32) * scale

    ys, xs = src_coords(H, out_h), src_coords(W, out_w)
    y0 = jnp.floor(ys).astype(jnp.int32)
    x0 = jnp.floor(xs).astype(jnp.int32)
    y1 = jnp.minimum(y0 + 1, H - 1)
    x1 = jnp.minimum(x0 + 1, W - 1)
    wy = (ys - y0.astype(jnp.float32))[:, None]
    wx = (xs - x0.astype(jnp.float32))[None, :]
    xf = x.astype(jnp.float32)
    top, bot = xf[:, :, y0, :], xf[:, :, y1, :]
    tl, tr = top[:, :, :, x0], top[:, :, :, x1]
    bl, br = bot[:, :, :, x0], bot[:, :, :, x1]
    t = tl * (1.0 - wx) + tr * wx
    b = bl * (1.0 - wx) + br * wx
    return t * (1.0 - wy) + b * wy


def silog_loss_ref(inp, tgt, mask=None, interpolate=True):
    if interpolate:
        inp = _interpolate_ref(inp, tgt.shape[-2:])
    g = jnp.log(inp.astype(jnp.float32)) - jnp.log(tgt.astype(jnp.float32))
    if mask is not None:
        valid = mask != 0
        cnt = jnp.sum(valid).astype(jnp.float32)
        gm = jnp.where(valid, g, 0.0)
        mean = jnp.sum(gm) / cnt
        var = jnp.sum(jnp.where(valid, (g - mean) ** 2, 0.0)) / (cnt - 1.0)
    else:
        gf = g.reshape(-1)
        mean = jnp.mean(gf)
        var = jnp.var(gf, ddof=1)
    return 10.0 * jnp.sqrt(var + 0.15 * mean * mean)


if __name__ == "__main__":
    key = jax.random.PRNGKey(0)
    k1, k2, k3, k4, k5, k6 = jax.random.split(key, 6)

    # 1) Small shapes consistent with the module: predicted depth at lower
    #    resolution, target at full resolution (exercises interpolation).
    N, C = 2, 1
    inp = jnp.exp(0.3 * jax.random.normal(k1, (N, C, 8, 8), jnp.float32)) + 0.1
    tgt = jnp.exp(0.3 * jax.random.normal(k2, (N, C, 16, 16), jnp.float32)) + 0.1
    out = jax.block_until_ready(silog_loss(inp, tgt, mask=None, interpolate=True))
    ref = jax.block_until_ready(silog_loss_ref(inp, tgt, None, True))
    assert jnp.allclose(out, ref, rtol=1e-4, atol=1e-4), (out, ref)

    # 2) Masked path (mask-aware kernel variant, raw bool mask).
    inp_m = jnp.exp(0.3 * jax.random.normal(k3, (N, C, 16, 16), jnp.float32)) + 0.1
    mask = jax.random.bernoulli(k4, 0.7, (N, C, 16, 16))
    out_m = jax.block_until_ready(silog_loss(inp_m, tgt, mask=mask, interpolate=True))
    ref_m = jax.block_until_ready(silog_loss_ref(inp_m, tgt, mask, True))
    assert jnp.allclose(out_m, ref_m, rtol=1e-4, atol=1e-4), (out_m, ref_m)

    # 3) Medium ragged shape: exercises multi-block accumulation, the ragged
    #    last block, and (on v7x) the phantom clamped block on core 1.
    big_shape = (1, 1, 2304, 640)   # 1,474,560 elems -> rows=2880 at lane=512
    inp_b = jnp.exp(0.3 * jax.random.normal(k5, big_shape, jnp.float32)) + 0.1
    tgt_b = jnp.exp(0.3 * jax.random.normal(k6, big_shape, jnp.float32)) + 0.1
    out_b = jax.block_until_ready(silog_loss(inp_b, tgt_b, mask=None, interpolate=False))
    ref_b = jax.block_until_ready(silog_loss_ref(inp_b, tgt_b, None, False))
    assert jnp.allclose(out_b, ref_b, rtol=1e-3, atol=1e-3), (out_b, ref_b)

    print("KERNEL_OK")
</pallas_src>

<mosaic_0001>
module attributes {stable_mosaic.version = 11 : i64} {
  func.func @_silog_reduce_kernel(%arg0: i32, %arg1: i32, %arg2: memref<1x512xf32, #tpu.memory_space<vmem>>, %arg3: memref<1x512xf32, #tpu.memory_space<vmem>>, %arg4: memref<8x128xf32, #tpu.memory_space<vmem>>, %arg5: memref<1x512xf32, #tpu.memory_space<vmem>>, %arg6: memref<1x512xf32, #tpu.memory_space<vmem>>) attributes {dimension_semantics = [#tpu.dimension_semantics<parallel>, #tpu.dimension_semantics<arbitrary>], iteration_bounds = array<i64: 1, 1>, scalar_prefetch = 0 : i64, scratch_operands = 2 : i64, tpu.core_type = #tpu.core_type<tc>, window_params = [{transform_indices = @transform_0, window_bounds = array<i64: 1, 512>}, {transform_indices = @transform_1, window_bounds = array<i64: 1, 512>}, {transform_indices = @transform_2, window_bounds = array<i64: 8, 128>}]} {
    %c0_i32 = arith.constant 0 : i32
    %0 = arith.cmpi eq, %arg1, %c0_i32 : i32
    %1 = arith.extui %0 : i1 to i32
    %c0_i32_0 = arith.constant 0 : i32
    %2 = arith.cmpi ne, %1, %c0_i32_0 : i32
    scf.if %2 {
      %cst_19 = arith.constant 0.000000e+00 : f32
      %34 = vector.broadcast %cst_19 : f32 to vector<1x512xf32>
      %c0_20 = arith.constant 0 : index
      %c0_21 = arith.constant 0 : index
      %35 = vector.load %arg5[%c0_20, %c0_21] : memref<1x512xf32, #tpu.memory_space<vmem>>, vector<1x512xf32>
      tpu.vector_store %arg5[%c0_20, %c0_21], %34 {strides = array<i32>} : memref<1x512xf32, #tpu.memory_space<vmem>>, vector<1x512xf32>,
      %cst_22 = arith.constant 0.000000e+00 : f32
      %36 = vector.broadcast %cst_22 : f32 to vector<1x512xf32>
      %c0_23 = arith.constant 0 : index
      %c0_24 = arith.constant 0 : index
      %37 = vector.load %arg6[%c0_23, %c0_24] : memref<1x512xf32, #tpu.memory_space<vmem>>, vector<1x512xf32>
      tpu.vector_store %arg6[%c0_23, %c0_24], %36 {strides = array<i32>} : memref<1x512xf32, #tpu.memory_space<vmem>>, vector<1x512xf32>,
    } else {
    }
    %c1_i32 = arith.constant 1 : i32
    %3 = arith.muli %arg0, %c1_i32 : i32
    %4 = arith.addi %3, %arg1 : i32
    %c1_i32_1 = arith.constant 1 : i32
    %5 = arith.muli %4, %c1_i32_1 : i32
    %6 = tpu.iota {dimensions = array<i32: 0>} : vector<1x512xi32>
    %7 = vector.broadcast %5 : i32 to vector<1x512xi32>
    %8 = arith.addi %7, %6 : vector<1x512xi32>
    %c1_i32_2 = arith.constant 1 : i32
    %9 = vector.broadcast %c1_i32_2 : i32 to vector<1x512xi32>
    %10 = arith.cmpi slt, %8, %9 : vector<1x512xi32>
    %c0 = arith.constant 0 : index
    %c0_3 = arith.constant 0 : index
    %11 = vector.load %arg2[%c0, %c0_3] : memref<1x512xf32, #tpu.memory_space<vmem>>, vector<1x512xf32>
    %cst = arith.constant 1.000000e+00 : f32
    %12 = vector.broadcast %cst : f32 to vector<1x512xf32>
    %13 = arith.select %10, %11, %12 : vector<1x512xi1>, vector<1x512xf32>
    %c0_4 = arith.constant 0 : index
    %c0_5 = arith.constant 0 : index
    %14 = vector.load %arg3[%c0_4, %c0_5] : memref<1x512xf32, #tpu.memory_space<vmem>>, vector<1x512xf32>
    %cst_6 = arith.constant 1.000000e+00 : f32
    %15 = vector.broadcast %cst_6 : f32 to vector<1x512xf32>
    %16 = arith.select %10, %14, %15 : vector<1x512xi1>, vector<1x512xf32>
    %17 = math.log %13 : vector<1x512xf32>
    %18 = math.log %16 : vector<1x512xf32>
    %19 = arith.subf %17, %18 : vector<1x512xf32>
    %c0_7 = arith.constant 0 : index
    %c0_8 = arith.constant 0 : index
    %20 = vector.load %arg5[%c0_7, %c0_8] : memref<1x512xf32, #tpu.memory_space<vmem>>, vector<1x512xf32>
    %cst_9 = arith.constant dense<0.000000e+00> : vector<512xf32>
    %21 = vector.multi_reduction <add>, %19, %cst_9 [0] : vector<1x512xf32> to vector<512xf32>
    %22 = vector.shape_cast %21 : vector<512xf32> to vector<1x512xf32>
    %23 = arith.addf %20, %22 : vector<1x512xf32>
    %c0_10 = arith.constant 0 : index
    %c0_11 = arith.constant 0 : index
    %24 = vector.load %arg5[%c0_10, %c0_11] : memref<1x512xf32, #tpu.memory_space<vmem>>, vector<1x512xf32>
    tpu.vector_store %arg5[%c0_10, %c0_11], %23 {strides = array<i32>} : memref<1x512xf32, #tpu.memory_space<vmem>>, vector<1x512xf32>,
    %c0_12 = arith.constant 0 : index
    %c0_13 = arith.constant 0 : index
    %25 = vector.load %arg6[%c0_12, %c0_13] : memref<1x512xf32, #tpu.memory_space<vmem>>, vector<1x512xf32>
    %26 = arith.mulf %19, %19 : vector<1x512xf32>
    %cst_14 = arith.constant dense<0.000000e+00> : vector<512xf32>
    %27 = vector.multi_reduction <add>, %26, %cst_14 [0] : vector<1x512xf32> to vector<512xf32>
    %28 = vector.shape_cast %27 : vector<512xf32> to vector<1x512xf32>
    %29 = arith.addf %25, %28 : vector<1x512xf32>
    %c0_15 = arith.constant 0 : index
    %c0_16 = arith.constant 0 : index
    %30 = vector.load %arg6[%c0_15, %c0_16] : memref<1x512xf32, #tpu.memory_space<vmem>>, vector<1x512xf32>
    tpu.vector_store %arg6[%c0_15, %c0_16], %29 {strides = array<i32>} : memref<1x512xf32, #tpu.memory_space<vmem>>, vector<1x512xf32>,
    %c0_i32_17 = arith.constant 0 : i32
    %31 = arith.cmpi eq, %arg1, %c0_i32_17 : i32
    %32 = arith.extui %31 : i1 to i32
    %c0_i32_18 = arith.constant 0 : i32
    %33 = arith.cmpi ne, %32, %c0_i32_18 : i32
    scf.if %33 {
      %c0_19 = arith.constant 0 : index
      %c0_20 = arith.constant 0 : index
      %34 = vector.load %arg5[%c0_19, %c0_20] : memref<1x512xf32, #tpu.memory_space<vmem>>, vector<1x512xf32>
      %35 = vector.shape_cast %34 : vector<1x512xf32> to vector<1x1x512xf32>
      %cst_21 = arith.constant dense<0.000000e+00> : vector<1xf32>
      %36 = vector.multi_reduction <add>, %35, %cst_21 [1, 2] : vector<1x1x512xf32> to vector<1xf32>
      %37 = vector.shape_cast %36 : vector<1xf32> to vector<1x1x1xf32>
      %38 = vector.extract %37[0, 0, 0] : f32 from vector<1x1x1xf32>
      %c0_22 = arith.constant 0 : index
      %c0_23 = arith.constant 0 : index
      %39 = vector.load %arg6[%c0_22, %c0_23] : memref<1x512xf32, #tpu.memory_space<vmem>>, vector<1x512xf32>
      %40 = vector.shape_cast %39 : vector<1x512xf32> to vector<1x1x512xf32>
      %cst_24 = arith.constant dense<0.000000e+00> : vector<1xf32>
      %41 = vector.multi_reduction <add>, %40, %cst_24 [1, 2] : vector<1x1x512xf32> to vector<1xf32>
      %42 = vector.shape_cast %41 : vector<1xf32> to vector<1x1x1xf32>
      %43 = vector.extract %42[0, 0, 0] : f32 from vector<1x1x1xf32>
      %44 = tpu.iota {dimensions = array<i32: 0>} : vector<8x128xi32>
      %c0_i32_25 = arith.constant 0 : i32
      %45 = vector.broadcast %c0_i32_25 : i32 to vector<8x128xi32>
      %46 = arith.cmpi eq, %44, %45 : vector<8x128xi32>
      %c1_i32_26 = arith.constant 1 : i32
      %47 = vector.broadcast %c1_i32_26 : i32 to vector<8x128xi32>
      %48 = arith.cmpi eq, %44, %47 : vector<8x128xi32>
      %cst_27 = arith.constant 0.000000e+00 : f32
      %49 = vector.broadcast %43 : f32 to vector<8x128xf32>
      %50 = vector.broadcast %cst_27 : f32 to vector<8x128xf32>
      %51 = arith.select %48, %49, %50 : vector<8x128xi1>, vector<8x128xf32>
      %52 = vector.broadcast %38 : f32 to vector<8x128xf32>
      %53 = arith.select %46, %52, %51 : vector<8x128xi1>, vector<8x128xf32>
      %c0_28 = arith.constant 0 : index
      %c0_29 = arith.constant 0 : index
      %54 = vector.load %arg4[%c0_28, %c0_29] : memref<8x128xf32, #tpu.memory_space<vmem>>, vector<8x128xf32>
      tpu.vector_store %arg4[%c0_28, %c0_29], %53 {strides = array<i32>} : memref<8x128xf32, #tpu.memory_space<vmem>>, vector<8x128xf32>,
    } else {
    }
    return
  }
  func.func @transform_0(%arg0: i32, %arg1: i32) -> (i32, i32) {
    %c1_i32 = arith.constant 1 : i32
    %0 = arith.muli %arg0, %c1_i32 : i32
    %1 = arith.addi %0, %arg1 : i32
    %c0_i32 = arith.constant 0 : i32
    %2 = arith.minsi %1, %c0_i32 : i32
    %c0_i32_0 = arith.constant 0 : i32
    %c0_i32_1 = arith.constant 0 : i32
    return %2, %c0_i32_0 : i32, i32
  }
  func.func @transform_1(%arg0: i32, %arg1: i32) -> (i32, i32) {
    %c1_i32 = arith.constant 1 : i32
    %0 = arith.muli %arg0, %c1_i32 : i32
    %1 = arith.addi %0, %arg1 : i32
    %c0_i32 = arith.constant 0 : i32
    %2 = arith.minsi %1, %c0_i32 : i32
    %c0_i32_0 = arith.constant 0 : i32
    %c0_i32_1 = arith.constant 0 : i32
    return %2, %c0_i32_0 : i32, i32
  }
  func.func @transform_2(%arg0: i32, %arg1: i32) -> (i32, i32) {
    %c0_i32 = arith.constant 0 : i32
    %c0_i32_0 = arith.constant 0 : i32
    return %arg0, %c0_i32 : i32, i32
  }
}

</mosaic_0001>

<llo_original>
// kernel: _silog_loss_impl.1
$region0: #{_silog_loss_impl.1}
  #allocation0 [shape = 'u32[]', space=smem, size = 0x4, offset = 0x4, fixed_abs, tag = 'smem constant byte address 0x4 - core index']
  #allocation1 [shape = 'u32[72,128]{1,0:T(1,128)}', space=vmem, size = 0x9000, scoped, tag = 'internal scratch']
  #allocation2 [shape = 'f32[1,512]{1,0:T(1,128)}', space=vmem, size = 0x800, scoped, tag = 'scratch operand']
  #allocation3 [shape = 'f32[1,512]{1,0:T(1,128)}', space=vmem, size = 0x800, scoped, tag = 'scratch operand']
  %s0 = inlined_call_operand.vmem [shape: f32[1,512], index: 0, kind: input, shape index: {}]
  %s1 = inlined_call_operand.vmem [shape: f32[1,512], index: 1, kind: input, shape index: {}]
  %s2 = inlined_call_operand.vmem [shape: f32[8,128], index: 2, kind: output, shape index: {}]
  %s3 = sld [smem:[#allocation0]]
  $region26: #{_silog_loss_impl.1} parent=0
    _
  %s5 = ssub.s32 1, %s3
  %s6 = scalar_select 0, %s5, %s3
  // Predicated region
  $region2: #{_silog_loss_impl.1} parent=0 // pred_check
    _
  $region3: #{_silog_loss_impl.1} parent=0 // pred_check_branch
    %8 = sbr.rel (0) target = $region5
  $region4: #{_silog_loss_impl.1} parent=0 // pred_region
    %s9 = sadd.s32 0, 0
    %p10 = scmp.lt.s32.totalorder %s9, 0
    %s11 = scalar_select %p10, %s9, 0
    %p12 = scmp.lt.s32.totalorder %s11, 0
    %s13 = scalar_select %p12, %s11, 0
    %s14 = smul.addr %s13, 4
    %s15 = scalar_lea.vmem %s0, %s14
    %s16 = sadd.s32 0, 0
    %p17 = scmp.lt.s32.totalorder %s16, 0
    %s18 = scalar_select %p17, %s16, 0
  $region5: #{_silog_loss_impl.1} parent=0 // pred_fallthru
    _
  // Predicated region
  $region6: #{_silog_loss_impl.1} parent=0 // pred_check
    _
  $region7: #{_silog_loss_impl.1} parent=0 // pred_check_branch
    %20 = sbr.rel (0) target = $region9
  $region8: #{_silog_loss_impl.1} parent=0 // pred_region
    %s21 = sadd.s32 0, 0
    %p22 = scmp.lt.s32.totalorder %s21, 0
    %s23 = scalar_select %p22, %s21, 0
    %p24 = scmp.lt.s32.totalorder %s23, 0
    %s25 = scalar_select %p24, %s23, 0
    %s26 = smul.addr %s25, 4
    %s27 = scalar_lea.vmem %s1, %s26
    %s28 = sadd.s32 0, 0
    %p29 = scmp.lt.s32.totalorder %s28, 0
    %s30 = scalar_select %p29, %s28, 0
  $region9: #{_silog_loss_impl.1} parent=0 // pred_fallthru
    _
  %s31 = sadd.s32 0, 0
  %p32 = scmp.lt.s32.totalorder %s31, 0
  %s33 = scalar_select %p32, %s31, 0
  %p34 = scmp.lt.s32.totalorder %s33, 0
  %s35 = scalar_select %p34, %s33, 0
  %s36 = smul.addr %s35, 4
  %s37 = scalar_lea.vmem %s0, %s36
  %s38 = sadd.s32 0, 0
  %p39 = scmp.lt.s32.totalorder %s38, 0
  %s40 = scalar_select %p39, %s38, 0
  %p41 = scmp.lt.s32.totalorder %s40, 0
  %s42 = scalar_select %p41, %s40, 0
  %s43 = smul.addr %s42, 4
  %s44 = scalar_lea.vmem %s1, %s43
  %s45 = sadd.s32 0, 0
  %p46 = scmp.lt.s32.totalorder %s45, 0
  %s47 = scalar_select %p46, %s45, 0
  %p48 = scmp.lt.s32.totalorder %s47, 0
  %s49 = scalar_select %p48, %s47, 0
  %s50 = smul.addr %s49, 4
  %s51 = scalar_lea.vmem %s0, %s50
  %s52 = sadd.s32 0, 0
  %p53 = scmp.lt.s32.totalorder %s52, 0
  %s54 = scalar_select %p53, %s52, 0
  %s55 = sadd.s32 0, 0
  %p56 = scmp.lt.s32.totalorder %s55, 0
  %s57 = scalar_select %p56, %s55, 0
  %p58 = scmp.lt.s32.totalorder %s57, 0
  %s59 = scalar_select %p58, %s57, 0
  %s60 = smul.addr %s59, 4
  %s61 = scalar_lea.vmem %s1, %s60
  %s62 = sadd.s32 0, 0
  %p63 = scmp.lt.s32.totalorder %s62, 0
  %s64 = scalar_select %p63, %s62, 0
  %p65 = scmp.eq.s32.totalorder 0, 0
  // Predicated region
  $region10: #{_silog_loss_impl.1} parent=0 // pred_check
    %p66 = pneg %p65
  $region11: #{_silog_loss_impl.1} parent=0 // pred_check_branch
    %68 = sbr.rel (%p66) target = $region13
  $region12: #{_silog_loss_impl.1} parent=0 // pred_region
    %v69 = vlaneseq
    %vm70 = vcmp.ge.s32.totalorder %v69, 0
    %vm71 = vcmp.lt.s32.totalorder %v69, 512
    %vm72 = vmand %vm70, %vm71
    %73 = vst.msk [vmem:[#allocation2] sm:$0xf] %vm72, 0.0
    %74 = vst.msk [vmem:[#allocation3] sm:$0xf] %vm72, 0.0
  $region13: #{_silog_loss_impl.1} parent=0 // pred_fallthru
    _
  %s75 = sadd.s32 0, 0
  %v76 = vlaneseq
  %v77 = vshrl.u32 %v76, 7
  %v78 = vstv %s75
  %v79 = vadd.s32 %v78, %v77
  %vm80 = vcmp.lt.s32.totalorder %v79, 1
  %v81 = vld [vmem:[%s51] sm:$0xf]
  %v83 = vperm.slane %v81, 0
  %v84 = vperm.slane %v81, 1
  %v85 = vperm.slane %v81, 2
  %v86 = vperm.slane %v81, 3
  %v91 = vsel %vm80, %v83, 1.0
  %v92 = vsel %vm80, %v84, 1.0
  %v93 = vsel %vm80, %v85, 1.0
  %v94 = vsel %vm80, %v86, 1.0
  %v95 = vld [vmem:[%s61] sm:$0xf]
  %v97 = vperm.slane %v95, 0
  %v98 = vperm.slane %v95, 1
  %v99 = vperm.slane %v95, 2
  %v100 = vperm.slane %v95, 3
  %v105 = vsel %vm80, %v97, 1.0
  %v106 = vsel %vm80, %v98, 1.0
  %v107 = vsel %vm80, %v99, 1.0
  %v108 = vsel %vm80, %v100, 1.0
  %v109 = vlog2.pop %v91
  %v110 = vmul.f32 %v109, 0.6931472
  %v111 = vlog2.pop %v92
  %v112 = vmul.f32 %v111, 0.6931472
  %v113 = vlog2.pop %v93
  %v114 = vmul.f32 %v113, 0.6931472
  %v115 = vlog2.pop %v94
  %v116 = vmul.f32 %v115, 0.6931472
  %v117 = vlog2.pop %v105
  %v118 = vmul.f32 %v117, 0.6931472
  %v119 = vlog2.pop %v106
  %v120 = vmul.f32 %v119, 0.6931472
  %v121 = vlog2.pop %v107
  %v122 = vmul.f32 %v121, 0.6931472
  %v123 = vlog2.pop %v108
  %v124 = vmul.f32 %v123, 0.6931472
  %v125 = vsub.f32 %v110, %v118
  %v126 = vsub.f32 %v112, %v120
  %v127 = vsub.f32 %v114, %v122
  %v128 = vsub.f32 %v116, %v124
  %v129 = vld [vmem:[#allocation2] sm:$0xf]
  %v130 = vadd.f32 %v125, 0.0
  %v131 = vadd.f32 %v126, 0.0
  %v132 = vadd.f32 %v127, 0.0
  %v133 = vadd.f32 %v128, 0.0
  %v138 = vrot.slane %v131, 7
  %v139 = vrot.slane %v132, 6
  %v140 = vrot.slane %v133, 5
  %vm141 = vcmask 1040384
  %v142 = vsel %vm141, %v130, %v138
  %vm143 = vcmask 1042434
  %v144 = vsel %vm143, %v139, %v140
  %vm145 = vcmask 1041408
  %v146 = vsel %vm145, %v142, %v144
  %v148 = vadd.f32 %v129, %v146
  %v149 = vlaneseq
  %vm150 = vcmp.ge.s32.totalorder %v149, 0
  %vm151 = vcmp.lt.s32.totalorder %v149, 512
  %vm152 = vmand %vm150, %vm151
  %153 = vst.msk [vmem:[#allocation2] sm:$0xf] %vm152, %v148
  %v154 = vld [vmem:[#allocation3] sm:$0xf]
  %v155 = vmul.f32 %v125, %v125
  %v156 = vmul.f32 %v126, %v126
  %v157 = vmul.f32 %v127, %v127
  %v158 = vmul.f32 %v128, %v128
  %v159 = vadd.f32 %v155, 0.0
  %v160 = vadd.f32 %v156, 0.0
  %v161 = vadd.f32 %v157, 0.0
  %v162 = vadd.f32 %v158, 0.0
  %v167 = vrot.slane %v160, 7
  %v168 = vrot.slane %v161, 6
  %v169 = vrot.slane %v162, 5
  %v170 = vsel %vm141, %v159, %v167
  %v171 = vsel %vm143, %v168, %v169
  %v172 = vsel %vm145, %v170, %v171
  %v174 = vadd.f32 %v154, %v172
  %175 = vst.msk [vmem:[#allocation3] sm:$0xf] %vm152, %v174
  // Predicated region
  $region14: #{_silog_loss_impl.1} parent=0 // pred_check
    %p176 = pneg %p65
  $region15: #{_silog_loss_impl.1} parent=0 // pred_check_branch
    %178 = sbr.rel (%p176) target = $region17
  $region16: #{_silog_loss_impl.1} parent=0 // pred_region
    %v179 = vld [vmem:[#allocation2] sm:$0xf]
    %v181 = vperm.slane %v179, 0
    %v182 = vperm.slane %v179, 1
    %v183 = vperm.slane %v179, 2
    %v184 = vperm.slane %v179, 3
    %v189 = vsel %vm141, %v181, 0.0
    %v190 = vsel %vm141, %v182, 0.0
    %v191 = vadd.f32 %v189, %v190
    %v192 = vsel %vm141, %v183, 0.0
    %v193 = vadd.f32 %v191, %v192
    %v194 = vsel %vm141, %v184, 0.0
    %v195 = vadd.f32 %v193, %v194
    %196 = vadd.xlane.f32.xlu0 %v195
    %v197 = vpop.xlane.xlu0 %196
    %v198 = vrot.slane %v197, 4
    %v199 = vadd.f32 %v197, %v198
    %v200 = vrot.slane %v199, 2
    %v201 = vadd.f32 %v199, %v200
    %v202 = vrot.slane %v201, 1
    %v203 = vadd.f32 %v201, %v202
    %s204 = vtos %v203
    %v205 = vld [vmem:[#allocation3] sm:$0xf]
    %v207 = vperm.slane %v205, 0
    %v208 = vperm.slane %v205, 1
    %v209 = vperm.slane %v205, 2
    %v210 = vperm.slane %v205, 3
    %v215 = vsel %vm141, %v207, 0.0
    %v216 = vsel %vm141, %v208, 0.0
    %v217 = vadd.f32 %v215, %v216
    %v218 = vsel %vm141, %v209, 0.0
    %v219 = vadd.f32 %v217, %v218
    %v220 = vsel %vm141, %v210, 0.0
    %v221 = vadd.f32 %v219, %v220
    %222 = vadd.xlane.f32.xlu0 %v221
    %v223 = vpop.xlane.xlu0 %222
    %v224 = vrot.slane %v223, 4
    %v225 = vadd.f32 %v223, %v224
    %v226 = vrot.slane %v225, 2
    %v227 = vadd.f32 %v225, %v226
    %v228 = vrot.slane %v227, 1
    %v229 = vadd.f32 %v227, %v228
    %s230 = vtos %v229
    %vm231 = vcmp.eq.s32.totalorder %v77, 0
    %vm232 = vcmp.eq.s32.totalorder %v77, 1
    %v233 = vstv %s230
    %v234 = vsel %vm232, %v233, 0.0
    %v235 = vstv %s204
    %v236 = vsel %vm231, %v235, %v234
    %237 = vst [vmem:[%s2] sm:$0xff] %v236
  $region17: #{_silog_loss_impl.1} parent=0 // pred_fallthru
    _
  // Predicated region
  $region18: #{_silog_loss_impl.1} parent=0 // pred_check
    _
  $region19: #{_silog_loss_impl.1} parent=0 // pred_check_branch
    %239 = sbr.rel (0) target = $region21
  $region20: #{_silog_loss_impl.1} parent=0 // pred_region
    _
  $region21: #{_silog_loss_impl.1} parent=0 // pred_fallthru
    _
  // Predicated region
  $region22: #{_silog_loss_impl.1} parent=0 // pred_check
    _
  $region23: #{_silog_loss_impl.1} parent=0 // pred_check_branch
    %241 = sbr.rel (0) target = $region25
  $region24: #{_silog_loss_impl.1} parent=0 // pred_region
    _
  $region25: #{_silog_loss_impl.1} parent=0 // pred_fallthru
    _

</llo_original>
